<compile_context>
chip_gen: v7x
topology: tpu7x:2x2x1
jax: 0.10.0
libtpu: 0.0.40
codegen_flags: <defaults>
</compile_context>

<pallas_src>
import jax
import jax.numpy as jnp
from jax.experimental import pallas as pl
from jax.experimental.pallas import tpu as pltpu

_BLOCK_BUDGET_BYTES = 4 * 1024 * 1024   # per input block (f32: 4 MiB in + 4 MiB out)
_MAX_LANE_TILE = 4096                   # lanes per block cap (multiple of 128)


def _sigmoid_loss_kernel(x_ref, o_ref):
    # sigmoid(-x) = 1 / (1 + exp(x)); exp + divide land on the EUP.
    x = x_ref[...].astype(jnp.float32)
    o_ref[...] = (1.0 / (1.0 + jnp.exp(x))).astype(o_ref.dtype)


def _as_2d(x):
    """Return a 2-D view of x, preferring layout-preserving collapses over repacks."""
    if x.ndim <= 1:
        return jnp.reshape(x, (1, x.size))
    last = x.shape[-1]
    if last % 128 == 0:
        # Collapse leading dims only (layout-preserving); no repack needed.
        return jnp.reshape(x, (-1, last))
    total = x.size
    if total % 128 == 0:
        lanes = 128
        for cand in (4096, 2048, 1024, 512, 256):
            if total % cand == 0:
                lanes = cand
                break
        return jnp.reshape(x, (total // lanes, lanes))   # dense repack, no padding
    # Rare fallback: neither trailing dim nor total is 128-aligned.
    # Lane-sparse blocks are slower but correct and avoid any pad/slice HBM passes.
    return jnp.reshape(x, (-1, last))


def _choose_tiles(M, N, itemsize):
    """Pick (TM, TN): large lane-dense blocks; ragged tails handled by cdiv grid."""
    # Lane tile: full dim when it fits, else a 128-multiple cap (ragged tail OK).
    TN = N if N <= _MAX_LANE_TILE else _MAX_LANE_TILE
    # Row tile: as many rows as fit the block budget, multiple of 8 (or full dim).
    rows_budget = max(8, (_BLOCK_BUDGET_BYTES // max(1, TN * itemsize)) // 8 * 8)
    TM = M if M <= rows_budget else rows_budget
    # Ensure >= 2 grid steps when there is enough work, so v7x's two TensorCores
    # can both stream (costs one extra negligible step on single-TC v5e/v6e).
    if pl.cdiv(M, TM) * pl.cdiv(N, TN) == 1:
        if M >= 16:
            TM = max(8, (((M + 1) // 2 + 7) // 8) * 8)
        elif N >= 256 and N % 128 == 0:
            TN = max(128, ((N // 2 + 127) // 128) * 128)
    return TM, TN


def sigmoid_loss_pallas(x, y=None, reduction="elementwise_mean"):
    # y / reduction are unused, matching the PyTorch module's semantics.
    del y, reduction
    orig_shape = x.shape
    if x.size == 0:
        return x

    x2d = _as_2d(x)
    M, N = x2d.shape
    itemsize = jnp.dtype(x.dtype).itemsize
    TM, TN = _choose_tiles(M, N, itemsize)
    grid = (pl.cdiv(M, TM), pl.cdiv(N, TN))

    # ~2x (in block + out block) for double-buffering, plus headroom;
    # capped well under every generation's per-core VMEM (64 MiB on v7x).
    block_bytes = TM * TN * itemsize
    vmem_limit = int(min(48 << 20, max(16 << 20, 6 * block_bytes)))

    out2d = pl.pallas_call(
        _sigmoid_loss_kernel,
        out_shape=jax.ShapeDtypeStruct((M, N), x.dtype),
        grid_spec=pltpu.PrefetchScalarGridSpec(
            num_scalar_prefetch=0,
            grid=grid,
            in_specs=[pl.BlockSpec((TM, TN), lambda i, j: (i, j))],
            out_specs=pl.BlockSpec((TM, TN), lambda i, j: (i, j)),
        ),
        compiler_params=pltpu.CompilerParams(
            dimension_semantics=("parallel", "parallel"),
            vmem_limit_bytes=vmem_limit,
        ),
    )(x2d)

    return jnp.reshape(out2d, orig_shape)


if __name__ == "__main__":
    key = jax.random.PRNGKey(0)
    k_x, k_y = jax.random.split(key)

    # Small NCHW input consistent with typical module usage.
    x = jax.random.normal(k_x, (2, 4, 16, 16), dtype=jnp.float32)
    # Target labels (ignored by the loss computation, as in the PyTorch module).
    y = jax.random.bernoulli(k_y, 0.5, (2, 4, 16, 16)).astype(jnp.float32)

    out = sigmoid_loss_pallas(x, y)
    out = jax.block_until_ready(out)

    # Sanity check against pure-JAX reference.
    ref = jax.nn.sigmoid(-x)
    assert out.shape == x.shape
    assert out.dtype == x.dtype
    assert jnp.max(jnp.abs(out - ref)) < 1e-5

    print("KERNEL_OK")
</pallas_src>

<mosaic_0001>
module attributes {stable_mosaic.version = 11 : i64} {
  func.func @_sigmoid_loss_kernel(%arg0: i32, %arg1: i32, %arg2: memref<1x1024xf32, #tpu.memory_space<vmem>>, %arg3: memref<1x1024xf32, #tpu.memory_space<vmem>>) attributes {dimension_semantics = [#tpu.dimension_semantics<parallel>, #tpu.dimension_semantics<parallel>], iteration_bounds = array<i64: 1, 2>, scalar_prefetch = 0 : i64, scratch_operands = 0 : i64, tpu.core_type = #tpu.core_type<tc>, window_params = [{transform_indices = @transform_0, window_bounds = array<i64: 1, 1024>}, {transform_indices = @transform_1, window_bounds = array<i64: 1, 1024>}]} {
    %c0 = arith.constant 0 : index
    %c0_0 = arith.constant 0 : index
    %0 = vector.load %arg2[%c0, %c0_0] : memref<1x1024xf32, #tpu.memory_space<vmem>>, vector<1x1024xf32>
    %1 = math.exp %0 : vector<1x1024xf32>
    %cst = arith.constant 1.000000e+00 : f32
    %2 = vector.broadcast %cst : f32 to vector<1x1024xf32>
    %3 = arith.addf %2, %1 : vector<1x1024xf32>
    %cst_1 = arith.constant 1.000000e+00 : f32
    %4 = vector.broadcast %cst_1 : f32 to vector<1x1024xf32>
    %5 = arith.divf %4, %3 : vector<1x1024xf32>
    %c0_2 = arith.constant 0 : index
    %c0_3 = arith.constant 0 : index
    %6 = vector.load %arg3[%c0_2, %c0_3] : memref<1x1024xf32, #tpu.memory_space<vmem>>, vector<1x1024xf32>
    tpu.vector_store %arg3[%c0_2, %c0_3], %5 {strides = array<i32>} : memref<1x1024xf32, #tpu.memory_space<vmem>>, vector<1x1024xf32>,
    return
  }
  func.func @transform_0(%arg0: i32, %arg1: i32) -> (i32, i32) {
    %c0_i32 = arith.constant 0 : i32
    return %arg0, %arg1 : i32, i32
  }
  func.func @transform_1(%arg0: i32, %arg1: i32) -> (i32, i32) {
    %c0_i32 = arith.constant 0 : i32
    return %arg0, %arg1 : i32, i32
  }
}

</mosaic_0001>

<llo_original>
// kernel: tpu_custom_call.1
$region0: #{tpu_custom_call.1}
  #allocation0 [shape = 'u32[]', space=smem, size = 0x4, offset = 0x4, fixed_abs, tag = 'smem constant byte address 0x4 - core index']
  #allocation1 [shape = 'u32[144,128]{1,0:T(1,128)}', space=vmem, size = 0x12000, scoped, tag = 'internal scratch']
  %s0 = inlined_call_operand.hbm [shape: f32[1,2048], index: 0, kind: input, shape index: {}]
  %s1 = inlined_call_operand.hbm [shape: f32[1,2048], index: 1, kind: output, shape index: {}]
  %s2 = sld [smem:[#allocation0]]
  $region41: #{tpu_custom_call.1} parent=0
    _
  %s4 = ssub.s32 1, %s2
  %s5 = scalar_select 0, %s4, %s2
  $region1: #{tpu_custom_call.1} parent=0
    #allocation2 [shape = 'u8[8192]{0}', space=vmem, size = 0x2000, scoped, tag = 'input window, operand 0']
    #allocation3 [shape = 's32[2]{0}', space=sflag, size = 0x8, scoped, tag = 'scoped memory for tpu_custom_call.1']
    #allocation4 [shape = 's32[2]{0}', space=sflag, size = 0x8, scoped, tag = 'scoped memory for tpu_custom_call.1']
    #allocation5 [shape = 'u8[8192]{0}', space=vmem, size = 0x2000, scoped, tag = 'output window, operand 0']
    %6 = vsyncpa [#allocation3], 0
    %s7 = scalar_lea.sflag [#allocation3], 1
    %8 = vsyncpa %s7, 0
    %9 = vsyncpa [#allocation4], 0
    %s10 = scalar_lea.sflag [#allocation4], 1
    %11 = vsyncpa %s10, 0
    loop: start=0, step=1, limit=4
    $region2: #{tpu_custom_call.1} parent=1 // loop_pre_header
      _
    $region3: #{tpu_custom_call.1} parent=1 // loop_header
      %s13 = sphi 0, %s17
      %p14 = scmp.ge.s32.totalorder %s13, 4
      %s20 = sphi 0, %s32
      %s21 = sphi 0, %s28
      %s22 = sphi 0, %s20
      %s23 = sphi 0, %s21
      %s24 = sphi 0, %s22
      %s25 = sphi 0, %s23
      %s37 = sphi 0, %s39
      %s40 = sphi 0, %s37
      %s41 = sphi 0, %s40
      %s57 = sphi 0, %s41
      %s65 = sphi 0, %s67
      %s68 = sphi 0, %s65
      %s69 = sphi 0, %s68
      %s85 = sphi 0, %s69
    $region4: #{tpu_custom_call.1} parent=1 // loop_header_branch
      %16 = sbr.rel (%p14) target = $region8
    $region5: #{tpu_custom_call.1} parent=1 // loop_body
      %s18 = ssub.s32 %s13, 1
      %s19 = ssub.s32 %s13, 2
      %s26 = sadd.s32 1, %s21
      %p27 = scmp.ge.s32.totalorder %s26, 2
      %s28 = scalar_select %p27, 0, %s26
      %s29 = sadd.s32 1, %s20
      %s30 = scalar_select %p27, %s29, %s20
      %p31 = scmp.ge.s32.totalorder %s30, 1
      %s32 = scalar_select %p31, 0, %s30
      %s33 = ssub.s32 %s20, %s32
      %s34 = ssub.s32 %s21, %s28
      %s35 = sor.u32 %s33, %s34
      %p36 = scmp.eq.s32.totalorder %s35, 0
      %s38 = sadd.s32 %s37, 1
      %s39 = scalar_select %p36, %s37, %s38
      %p42 = pneg %p36
      %p43 = scmp.eq.s32.totalorder %s13, 1
      %p44 = por %p42, %p43
      %p45 = scmp.ne.s32.totalorder %s37, %s40
      %p46 = scmp.eq.s32.totalorder %s13, 0
      %p47 = por %p45, %p46
      %p48 = scmp.ne.s32.totalorder %s37, %s40
      %p49 = scmp.eq.s32.totalorder %s18, 1
      %p50 = por %p48, %p49
      %p51 = scmp.ne.s32.totalorder %s40, %s41
      %p52 = scmp.eq.s32.totalorder %s18, 0
      %p53 = por %p51, %p52
      %p54 = scmp.ne.s32.totalorder %s40, %s41
      %p55 = scmp.eq.s32.totalorder %s19, 1
      %p56 = por %p54, %p55
      %p58 = scmp.ne.s32.totalorder %s41, %s57
      %p59 = scmp.eq.s32.totalorder %s19, 0
      %p60 = por %p58, %p59
      %s61 = ssub.s32 %s20, %s32
      %s62 = ssub.s32 %s21, %s28
      %s63 = sor.u32 %s61, %s62
      %p64 = scmp.eq.s32.totalorder %s63, 0
      %s66 = sadd.s32 %s65, 1
      %s67 = scalar_select %p64, %s65, %s66
      %p70 = pneg %p64
      %p71 = scmp.eq.s32.totalorder %s13, 1
      %p72 = por %p70, %p71
      %p73 = scmp.ne.s32.totalorder %s65, %s68
      %p74 = scmp.eq.s32.totalorder %s13, 0
      %p75 = por %p73, %p74
      %p76 = scmp.ne.s32.totalorder %s65, %s68
      %p77 = scmp.eq.s32.totalorder %s18, 1
      %p78 = por %p76, %p77
      %p79 = scmp.ne.s32.totalorder %s68, %s69
      %p80 = scmp.eq.s32.totalorder %s18, 0
      %p81 = por %p79, %p80
      %p82 = scmp.ne.s32.totalorder %s68, %s69
      %p83 = scmp.eq.s32.totalorder %s19, 1
      %p84 = por %p82, %p83
      %p86 = scmp.ne.s32.totalorder %s69, %s85
      %p87 = scmp.eq.s32.totalorder %s19, 0
      %p88 = por %p86, %p87
      %p89 = scmp.le.s32.totalorder 1, %s13
      %p90 = scmp.lt.s32.totalorder %s13, 3
      %p91 = pnand %p89, %p90
      %p92 = pneg %p91
      // Predicated region
      $region9: #{tpu_custom_call.1} parent=5 // pred_check
        _
      $region10: #{tpu_custom_call.1} parent=5 // pred_check_branch
        %94 = sbr.rel (%p91) target = $region12
      $region11: #{tpu_custom_call.1} parent=5 // pred_region
        %s95 = ssub.s32 %s13, 1
      $region12: #{tpu_custom_call.1} parent=5 // pred_fallthru
        _
      %p96 = scmp.lt.s32.totalorder %s13, 2
      // Predicated region
      $region13: #{tpu_custom_call.1} parent=5 // pred_check
        %p97 = pneg %p96
      $region14: #{tpu_custom_call.1} parent=5 // pred_check_branch
        %99 = sbr.rel (%p97) target = $region16
      $region15: #{tpu_custom_call.1} parent=5 // pred_region
        // Predicated region
        $region17: #{tpu_custom_call.1} parent=15 // pred_check
          %p100 = pneg %p47
        $region18: #{tpu_custom_call.1} parent=15 // pred_check_branch
          %102 = sbr.rel (%p100) target = $region20
        $region19: #{tpu_custom_call.1} parent=15 // pred_region
          %s103 = sand.u32 %s37, 1
          %s104 = scalar_lea.sflag [#allocation3], %s103
          %s105 = sand.u32 %s37, 1
          %s106 = smul.addr %s105, 8
          %s107 = scalar_lea.vmem [#allocation2], %s106
          %s108 = smul.u32 8, %s21
          %s110 = ssub.s32 128, 128
          %111 = vsyncadd %s104, %s110
          %s112 = smul.addr %s20, 16
          %s113 = sadd.s32 %s108, %s112
          %s114 = smul.addr %s113, 16
          %s115 = scalar_lea.hbm %s0, %s114
          %s117 = sshll.u32 %s107, 4
          %s118 = int_to_ptr.vmem [resolvable:$true] %s117
          %120 = dma.hbm_to_vmem [thread:$0]  %s115, 128, %s118, %s104
        $region20: #{tpu_custom_call.1} parent=15 // pred_fallthru
          _
      $region16: #{tpu_custom_call.1} parent=5 // pred_fallthru
        _
      %p121 = scmp.le.s32.totalorder 1, %s13
      %p122 = scmp.lt.s32.totalorder %s13, 3
      %p123 = pnand %p121, %p122
      %p124 = pneg %p123
      // Predicated region
      $region21: #{tpu_custom_call.1} parent=5 // pred_check
        _
      $region22: #{tpu_custom_call.1} parent=5 // pred_check_branch
        %126 = sbr.rel (%p123) target = $region24
      $region23: #{tpu_custom_call.1} parent=5 // pred_region
        %s127 = ssub.s32 %s13, 1
        %s128 = sand.u32 %s40, 1
        %s129 = scalar_lea.sflag [#allocation3], %s128
        %s130 = sand.u32 %s40, 1
        %s131 = smul.addr %s130, 8
        %s132 = scalar_lea.vmem [#allocation2], %s131
        // Predicated region
        $region25: #{tpu_custom_call.1} parent=23 // pred_check
          %p133 = pneg %p53
        $region26: #{tpu_custom_call.1} parent=23 // pred_check_branch
          %135 = sbr.rel (%p133) target = $region28
        $region27: #{tpu_custom_call.1} parent=23 // pred_region
          %136 = dma.done %s129, 128
        $region28: #{tpu_custom_call.1} parent=23 // pred_fallthru
          _
        %s137 = sand.u32 %s40, 1
        %s138 = scalar_lea.sflag [#allocation3], %s137
        %s139 = sand.u32 %s40, 1
        %s140 = smul.addr %s139, 8
        %s141 = scalar_lea.vmem [#allocation2], %s140
        %p142 = pneg %p53
        %p143 = pneg %p50
        %p144 = pneg %p81
        %p145 = pneg %p78
        %s146 = sand.u32 %s68, 1
        %s147 = scalar_lea.sflag [#allocation4], %s146
        %s148 = sand.u32 %s68, 1
        %s149 = smul.addr %s148, 8
        %s150 = scalar_lea.vmem [#allocation5], %s149
        %s151 = smul.u32 8, %s23
        %s152 = smul.u32 8, %s23
        %v153 = vld [vmem:[%s132] sm:$0xff]
        %v154 = vmul.f32 %v153, 1.442695
        %v155 = vpow.pop %v154
        %v156 = vadd.f32 %v155, 1.0
        %v157 = vrcp.pop %v156
        %v158 = vmul.f32 1.0, %v157
        %159 = vst [vmem:[%s150] sm:$0xff] %v158
        %s160 = sand.u32 %s68, 1
        %s161 = scalar_lea.sflag [#allocation4], %s160
        %s162 = sand.u32 %s68, 1
        %s163 = smul.addr %s162, 8
        %s164 = scalar_lea.vmem [#allocation5], %s163
        // Predicated region
        $region29: #{tpu_custom_call.1} parent=23 // pred_check
          %p165 = pneg %p78
        $region30: #{tpu_custom_call.1} parent=23 // pred_check_branch
          %167 = sbr.rel (%p165) target = $region32
        $region31: #{tpu_custom_call.1} parent=23 // pred_region
          %s168 = smul.u32 8, %s23
          %s170 = ssub.s32 128, 128
          %171 = vsyncadd %s161, %s170
          %s172 = smul.addr %s22, 16
          %s173 = sadd.s32 %s168, %s172
          %s174 = smul.addr %s173, 16
          %s175 = scalar_lea.hbm %s1, %s174
          %s177 = sshll.u32 %s164, 4
          %s178 = int_to_ptr.vmem [resolvable:$true] %s177
          %180 = dma.vmem_to_hbm [thread:$0]  %s178, 128, %s175, %s161
        $region32: #{tpu_custom_call.1} parent=23 // pred_fallthru
          _
      $region24: #{tpu_custom_call.1} parent=5 // pred_fallthru
        _
      %p181 = scmp.le.s32.totalorder 2, %s13
      // Predicated region
      $region33: #{tpu_custom_call.1} parent=5 // pred_check
        %p182 = pneg %p181
      $region34: #{tpu_custom_call.1} parent=5 // pred_check_branch
        %184 = sbr.rel (%p182) target = $region36
      $region35: #{tpu_custom_call.1} parent=5 // pred_region
        %s185 = ssub.s32 %s13, 2
        // Predicated region
        $region37: #{tpu_custom_call.1} parent=35 // pred_check
          %p186 = pneg %p84
        $region38: #{tpu_custom_call.1} parent=35 // pred_check_branch
          %188 = sbr.rel (%p186) target = $region40
        $region39: #{tpu_custom_call.1} parent=35 // pred_region
          %s189 = sand.u32 %s69, 1
          %s190 = scalar_lea.sflag [#allocation4], %s189
          %s191 = sand.u32 %s69, 1
          %s192 = smul.addr %s191, 8
          %s193 = scalar_lea.vmem [#allocation5], %s192
          %194 = dma.done %s190, 128
        $region40: #{tpu_custom_call.1} parent=35 // pred_fallthru
          _
      $region36: #{tpu_custom_call.1} parent=5 // pred_fallthru
        _
    $region6: #{tpu_custom_call.1} parent=1 // loop_footer
      %s17 = sadd.s32 1, %s13
    $region7: #{tpu_custom_call.1} parent=1 // loop_footer_branch
      %12 = sbr.rel target = $region3
    $region8: #{tpu_custom_call.1} parent=1 // loop_exit
      _
    %195 = vsyncpa [#allocation3], 1
    %s196 = scalar_lea.sflag [#allocation3], 1
    %197 = vsyncpa %s196, 1
    %198 = vsyncpa [#allocation4], 1
    %s199 = scalar_lea.sflag [#allocation4], 1
    %200 = vsyncpa %s199, 1

</llo_original>
